<compile_context>
chip_gen: v5e
topology: v5e:2x2
jax: 0.10.0
libtpu: 0.0.40
codegen_flags: <defaults>
</compile_context>

<pallas_src>
import functools

import jax
import jax.numpy as jnp
from jax.experimental import pallas as pl
from jax.experimental.pallas import tpu as pltpu


# ----------------------------------------------------------------------------
# Fused Pallas kernel (all layers + both directions + FC, single invocation)
# ----------------------------------------------------------------------------
def _make_fused_lstm_kernel(T, B, H, num_layers, num_dirs):
    """Ref order (inputs, outputs, scratch):

    inputs : x_flat (T*B, E),
             per layer, per dir: wih_t (D_in, 4H), whh_t (H, 4H), b (1, 4H),
             fc_w_t (num_dirs*H, C), fc_b (1, C)
    outputs: logits (B, C)
    scratch: xp[d]  (T*B, 4H) per direction  -- hoisted input projections
             seq[d] (T*B, H)  per direction  -- layer outputs (only if L > 1)
    """
    G = 4 * H

    def kernel(*refs):
        it = iter(refs)
        x_ref = next(it)
        layer_w = [[(next(it), next(it), next(it)) for _ in range(num_dirs)]
                   for _ in range(num_layers)]
        fcw_ref = next(it)
        fcb_ref = next(it)
        logits_ref = next(it)
        xp_scr = [next(it) for _ in range(num_dirs)]
        seq_scr = [next(it) for _ in range(num_dirs)] if num_layers > 1 else None

        # Lane mask selecting the 'g' gate quarter (PyTorch gate order i,f,g,o).
        # Hoisted once: one full-width sigmoid + one full-width tanh per step.
        lane = jax.lax.broadcasted_iota(jnp.int32, (B, G), 1)
        g_mask = (lane >= 2 * H) & (lane < 3 * H)

        def project_inputs(layer):
            # Hoisted input projection: one big matmul per direction instead of
            # T tiny per-step matmuls.
            for d in range(num_dirs):
                wih_ref, _, b_ref = layer_w[layer][d]
                if layer == 0:
                    proj = jnp.dot(x_ref[...], wih_ref[...],
                                   preferred_element_type=jnp.float32)
                else:
                    # Layer input is concat(seq_fwd, seq_bwd) along features;
                    # split the matmul so the concat is never materialized.
                    wih = wih_ref[...]                      # (num_dirs*H, 4H)
                    proj = jnp.dot(seq_scr[0][...], wih[0:H, :],
                                   preferred_element_type=jnp.float32)
                    if num_dirs == 2:
                        proj = proj + jnp.dot(seq_scr[1][...], wih[H:2 * H, :],
                                              preferred_element_type=jnp.float32)
                xp_scr[d][...] = proj + b_ref[...]

        def run_direction(layer, d, write_seq):
            whh = layer_w[layer][d][1][...]                 # (H, 4H), hoisted
            xp_ref = xp_scr[d]
            reverse = (d == 1)

            def step(s, carry):
                h, c = carry
                t = (T - 1 - s) if reverse else s
                row = t * B
                gates = (xp_ref[pl.ds(row, B), :]
                         + jnp.dot(h, whh, preferred_element_type=jnp.float32))
                act = jnp.where(g_mask, jnp.tanh(gates), jax.nn.sigmoid(gates))
                i = act[:, 0:H]
                f = act[:, H:2 * H]
                g = act[:, 2 * H:3 * H]
                o = act[:, 3 * H:4 * H]
                c = f * c + i * g
                h = o * jnp.tanh(c)
                if write_seq:
                    seq_scr[d][pl.ds(row, B), :] = h
                return h, c

            h0 = jnp.zeros((B, H), jnp.float32)
            c0 = jnp.zeros((B, H), jnp.float32)
            h_fin, _ = jax.lax.fori_loop(0, T, step, (h0, c0))
            return h_fin

        finals = None
        for layer in range(num_layers):
            project_inputs(layer)
            write_seq = layer < num_layers - 1   # last layer: only finals needed
            finals = [run_direction(layer, d, write_seq) for d in range(num_dirs)]

        # FC on cat(final_fwd, final_bwd); split matmul avoids the concat.
        fcw = fcw_ref[...]                                  # (num_dirs*H, C)
        logits = jnp.dot(finals[0], fcw[0:H, :],
                         preferred_element_type=jnp.float32)
        if num_dirs == 2:
            logits = logits + jnp.dot(finals[1], fcw[H:2 * H, :],
                                      preferred_element_type=jnp.float32)
        logits_ref[...] = logits + fcb_ref[...]

    return kernel


# ----------------------------------------------------------------------------
# Wrapper
# ----------------------------------------------------------------------------
def lstm_classifier_forward(text, params, num_layers, bidirectional):
    """Forward pass matching LSTMClassifier.forward (inference mode)."""
    T, B = text.shape
    emb = params["embedding"]
    E = emb.shape[1]
    # Embedding lookup (gather) kept as plain JAX glue; flattened to (T*B, E)
    # so the kernel works on lane/sublane-friendly 2-D slabs with no reshapes.
    x = emb[text].reshape(T * B, E)

    num_dirs = 2 if bidirectional else 1
    H = params["lstm"][0][0]["whh_t"].shape[0]
    C = params["fc_w_t"].shape[1]

    args = [x]
    for layer in range(num_layers):
        for d in range(num_dirs):
            p = params["lstm"][layer][d]
            args += [p["wih_t"], p["whh_t"], p["b"].reshape(1, 4 * H)]
    args += [params["fc_w_t"], params["fc_b"].reshape(1, C)]

    scratch = [pltpu.VMEM((T * B, 4 * H), jnp.float32) for _ in range(num_dirs)]
    if num_layers > 1:
        scratch += [pltpu.VMEM((T * B, H), jnp.float32) for _ in range(num_dirs)]

    kernel = _make_fused_lstm_kernel(T, B, H, num_layers, num_dirs)
    return pl.pallas_call(
        kernel,
        out_shape=jax.ShapeDtypeStruct((B, C), jnp.float32),
        scratch_shapes=scratch,
    )(*args)


# ----------------------------------------------------------------------------
# Pure-JAX reference (correctness check)
# ----------------------------------------------------------------------------
def ref_lstm_layer_direction(x, wih_t, whh_t, b):
    H = whh_t.shape[0]

    def step(carry, xt):
        h, c = carry
        gates = xt @ wih_t + h @ whh_t + b
        i = jax.nn.sigmoid(gates[:, 0 * H:1 * H])
        f = jax.nn.sigmoid(gates[:, 1 * H:2 * H])
        g = jnp.tanh(gates[:, 2 * H:3 * H])
        o = jax.nn.sigmoid(gates[:, 3 * H:4 * H])
        c = f * c + i * g
        h = o * jnp.tanh(c)
        return (h, c), h

    B = x.shape[1]
    init = (jnp.zeros((B, H), jnp.float32), jnp.zeros((B, H), jnp.float32))
    _, hs = jax.lax.scan(step, init, x)
    return hs


def ref_forward(text, params, num_layers, bidirectional):
    x = params["embedding"][text]
    num_dirs = 2 if bidirectional else 1
    finals = None
    for layer in range(num_layers):
        outs, finals = [], []
        for d in range(num_dirs):
            p = params["lstm"][layer][d]
            x_in = x if d == 0 else x[::-1]
            hs = ref_lstm_layer_direction(x_in, p["wih_t"], p["whh_t"], p["b"])
            finals.append(hs[-1])
            outs.append(hs if d == 0 else hs[::-1])
        x = jnp.concatenate(outs, axis=-1) if bidirectional else outs[0]
    hidden = jnp.concatenate(finals, axis=1) if bidirectional else finals[0]
    return hidden @ params["fc_w_t"] + params["fc_b"]


# ----------------------------------------------------------------------------
# Deterministic parameter init
# ----------------------------------------------------------------------------
def init_params(key, vocab_size, embedding_dim, hidden_dim, num_classes,
                num_layers, bidirectional):
    num_dirs = 2 if bidirectional else 1
    keys = iter(jax.random.split(key, 4 + num_layers * num_dirs * 4))
    bound = 1.0 / jnp.sqrt(hidden_dim)

    params = {
        "embedding": jax.random.normal(
            next(keys), (vocab_size, embedding_dim), jnp.float32),
        "lstm": [],
    }
    for layer in range(num_layers):
        in_dim = embedding_dim if layer == 0 else hidden_dim * num_dirs
        dirs = []
        for _ in range(num_dirs):
            wih = jax.random.uniform(next(keys), (4 * hidden_dim, in_dim),
                                     jnp.float32, -bound, bound)
            whh = jax.random.uniform(next(keys), (4 * hidden_dim, hidden_dim),
                                     jnp.float32, -bound, bound)
            b_ih = jax.random.uniform(next(keys), (4 * hidden_dim,),
                                      jnp.float32, -bound, bound)
            b_hh = jax.random.uniform(next(keys), (4 * hidden_dim,),
                                      jnp.float32, -bound, bound)
            dirs.append({"wih_t": wih.T, "whh_t": whh.T, "b": b_ih + b_hh})
        params["lstm"].append(dirs)

    fc_in = hidden_dim * num_dirs
    fc_bound = 1.0 / jnp.sqrt(fc_in)
    fc_w = jax.random.uniform(next(keys), (num_classes, fc_in),
                              jnp.float32, -fc_bound, fc_bound)
    fc_b = jax.random.uniform(next(keys), (num_classes,),
                              jnp.float32, -fc_bound, fc_bound)
    params["fc_w_t"] = fc_w.T
    params["fc_b"] = fc_b
    return params


# ----------------------------------------------------------------------------
if __name__ == "__main__":
    vocab_size = 50
    embedding_dim = 16
    hidden_dim = 32
    num_classes = 3
    num_layers = 2
    bidirectional = True
    seq_len = 8
    batch = 2

    key = jax.random.PRNGKey(0)
    k_param, k_text = jax.random.split(key)
    params = init_params(k_param, vocab_size, embedding_dim, hidden_dim,
                         num_classes, num_layers, bidirectional)
    text = jax.random.randint(k_text, (seq_len, batch), 0, vocab_size,
                              dtype=jnp.int32)  # [T, B] token ids

    fwd = jax.jit(functools.partial(lstm_classifier_forward,
                                    num_layers=num_layers,
                                    bidirectional=bidirectional))
    logits = jax.block_until_ready(fwd(text, params))

    ref = jax.block_until_ready(
        ref_forward(text, params, num_layers, bidirectional))
    assert logits.shape == (batch, num_classes)
    assert jnp.allclose(logits, ref, atol=1e-4, rtol=1e-4), (
        f"mismatch:\n{logits}\nvs\n{ref}")
    print("KERNEL_OK")
</pallas_src>

<mosaic_0001>
module attributes {stable_mosaic.version = 11 : i64} {
  func.func @kernel(%arg0: memref<16x16xf32, #tpu.memory_space<vmem>>, %arg1: memref<16x128xf32, #tpu.memory_space<vmem>>, %arg2: memref<32x128xf32, #tpu.memory_space<vmem>>, %arg3: memref<1x128xf32, #tpu.memory_space<vmem>>, %arg4: memref<16x128xf32, #tpu.memory_space<vmem>>, %arg5: memref<32x128xf32, #tpu.memory_space<vmem>>, %arg6: memref<1x128xf32, #tpu.memory_space<vmem>>, %arg7: memref<64x128xf32, #tpu.memory_space<vmem>>, %arg8: memref<32x128xf32, #tpu.memory_space<vmem>>, %arg9: memref<1x128xf32, #tpu.memory_space<vmem>>, %arg10: memref<64x128xf32, #tpu.memory_space<vmem>>, %arg11: memref<32x128xf32, #tpu.memory_space<vmem>>, %arg12: memref<1x128xf32, #tpu.memory_space<vmem>>, %arg13: memref<64x3xf32, #tpu.memory_space<vmem>>, %arg14: memref<1x3xf32, #tpu.memory_space<vmem>>, %arg15: memref<2x3xf32, #tpu.memory_space<vmem>>, %arg16: memref<16x128xf32, #tpu.memory_space<vmem>>, %arg17: memref<16x128xf32, #tpu.memory_space<vmem>>, %arg18: memref<16x32xf32, #tpu.memory_space<vmem>>, %arg19: memref<16x32xf32, #tpu.memory_space<vmem>>) attributes {dimension_semantics = [], scalar_prefetch = 0 : i64, scratch_operands = 4 : i64, tpu.core_type = #tpu.core_type<tc>} {
    %0 = tpu.iota {dimensions = array<i32: 1>} : vector<2x128xi32>
    %c64_i32 = arith.constant 64 : i32
    %1 = vector.broadcast %c64_i32 : i32 to vector<2x128xi32>
    %2 = arith.cmpi sge, %0, %1 : vector<2x128xi32>
    %c96_i32 = arith.constant 96 : i32
    %3 = vector.broadcast %c96_i32 : i32 to vector<2x128xi32>
    %4 = arith.cmpi slt, %0, %3 : vector<2x128xi32>
    %5 = arith.andi %2, %4 : vector<2x128xi1>
    %c0 = arith.constant 0 : index
    %c0_0 = arith.constant 0 : index
    %6 = vector.load %arg0[%c0, %c0_0] : memref<16x16xf32, #tpu.memory_space<vmem>>, vector<16x16xf32>
    %c0_1 = arith.constant 0 : index
    %c0_2 = arith.constant 0 : index
    %7 = vector.load %arg1[%c0_1, %c0_2] : memref<16x128xf32, #tpu.memory_space<vmem>>, vector<16x128xf32>
    %cst = arith.constant dense<0.000000e+00> : vector<16x128xf32>
    %8 = tpu.matmul %6, %7, %cst {dimension_numbers = #tpu.dot_dimension_numbers<[1], [0], [0], [1], [0, 0, 1, 1], [], []>} : vector<16x16xf32>, vector<16x128xf32>, vector<16x128xf32> -> vector<16x128xf32>
    %c0_3 = arith.constant 0 : index
    %c0_4 = arith.constant 0 : index
    %9 = vector.load %arg3[%c0_3, %c0_4] : memref<1x128xf32, #tpu.memory_space<vmem>>, vector<1x128xf32>
    %10 = vector.broadcast %9 : vector<1x128xf32> to vector<16x128xf32>
    %11 = arith.addf %8, %10 : vector<16x128xf32>
    %c0_5 = arith.constant 0 : index
    %c0_6 = arith.constant 0 : index
    %12 = vector.load %arg16[%c0_5, %c0_6] : memref<16x128xf32, #tpu.memory_space<vmem>>, vector<16x128xf32>
    tpu.vector_store %arg16[%c0_5, %c0_6], %11 {strides = array<i32>} : memref<16x128xf32, #tpu.memory_space<vmem>>, vector<16x128xf32>,
    %c0_7 = arith.constant 0 : index
    %c0_8 = arith.constant 0 : index
    %13 = vector.load %arg0[%c0_7, %c0_8] : memref<16x16xf32, #tpu.memory_space<vmem>>, vector<16x16xf32>
    %c0_9 = arith.constant 0 : index
    %c0_10 = arith.constant 0 : index
    %14 = vector.load %arg4[%c0_9, %c0_10] : memref<16x128xf32, #tpu.memory_space<vmem>>, vector<16x128xf32>
    %cst_11 = arith.constant dense<0.000000e+00> : vector<16x128xf32>
    %15 = tpu.matmul %13, %14, %cst_11 {dimension_numbers = #tpu.dot_dimension_numbers<[1], [0], [0], [1], [0, 0, 1, 1], [], []>} : vector<16x16xf32>, vector<16x128xf32>, vector<16x128xf32> -> vector<16x128xf32>
    %c0_12 = arith.constant 0 : index
    %c0_13 = arith.constant 0 : index
    %16 = vector.load %arg6[%c0_12, %c0_13] : memref<1x128xf32, #tpu.memory_space<vmem>>, vector<1x128xf32>
    %17 = vector.broadcast %16 : vector<1x128xf32> to vector<16x128xf32>
    %18 = arith.addf %15, %17 : vector<16x128xf32>
    %c0_14 = arith.constant 0 : index
    %c0_15 = arith.constant 0 : index
    %19 = vector.load %arg17[%c0_14, %c0_15] : memref<16x128xf32, #tpu.memory_space<vmem>>, vector<16x128xf32>
    tpu.vector_store %arg17[%c0_14, %c0_15], %18 {strides = array<i32>} : memref<16x128xf32, #tpu.memory_space<vmem>>, vector<16x128xf32>,
    %c0_16 = arith.constant 0 : index
    %c0_17 = arith.constant 0 : index
    %20 = vector.load %arg2[%c0_16, %c0_17] : memref<32x128xf32, #tpu.memory_space<vmem>>, vector<32x128xf32>
    %cst_18 = arith.constant 0.000000e+00 : f32
    %21 = vector.broadcast %cst_18 : f32 to vector<2x32xf32>
    %cst_19 = arith.constant 0.000000e+00 : f32
    %22 = vector.broadcast %cst_19 : f32 to vector<2x32xf32>
    %c0_i32 = arith.constant 0 : i32
    %c8_i32 = arith.constant 8 : i32
    %23 = arith.addi %c0_i32, %c8_i32 : i32
    %c1_i32 = arith.constant 1 : i32
    %24:2 = scf.for %arg20 = %c0_i32 to %23 step %c1_i32 iter_args(%arg21 = %21, %arg22 = %22) -> (vector<2x32xf32>, vector<2x32xf32>)  : i32 {
      %c2_i32 = arith.constant 2 : i32
      %74 = arith.muli %arg20, %c2_i32 : i32
      %75 = arith.index_cast %74 : i32 to index
      %c0_77 = arith.constant 0 : index
      %76 = vector.load %arg16[%75, %c0_77] : memref<16x128xf32, #tpu.memory_space<vmem>>, vector<2x128xf32>
      %cst_78 = arith.constant dense<0.000000e+00> : vector<2x128xf32>
      %77 = tpu.matmul %arg21, %20, %cst_78 {dimension_numbers = #tpu.dot_dimension_numbers<[1], [0], [0], [1], [0, 0, 1, 1], [], []>} : vector<2x32xf32>, vector<32x128xf32>, vector<2x128xf32> -> vector<2x128xf32>
      %78 = arith.addf %76, %77 : vector<2x128xf32>
      %79 = math.tanh %78 : vector<2x128xf32>
      %80 = arith.negf %78 : vector<2x128xf32>
      %81 = math.exp %80 : vector<2x128xf32>
      %cst_79 = arith.constant 1.000000e+00 : f32
      %82 = vector.broadcast %cst_79 : f32 to vector<2x128xf32>
      %83 = arith.addf %82, %81 : vector<2x128xf32>
      %84 = arith.divf %82, %83 : vector<2x128xf32>
      %85 = arith.select %5, %79, %84 : vector<2x128xi1>, vector<2x128xf32>
      %86 = vector.extract_strided_slice %85 {offsets = [0, 0], sizes = [2, 32], strides = [1, 1]} : vector<2x128xf32> to vector<2x32xf32>
      %87 = vector.extract_strided_slice %85 {offsets = [0, 32], sizes = [2, 32], strides = [1, 1]} : vector<2x128xf32> to vector<2x32xf32>
      %88 = vector.extract_strided_slice %85 {offsets = [0, 64], sizes = [2, 32], strides = [1, 1]} : vector<2x128xf32> to vector<2x32xf32>
      %89 = vector.extract_strided_slice %85 {offsets = [0, 96], sizes = [2, 32], strides = [1, 1]} : vector<2x128xf32> to vector<2x32xf32>
      %90 = arith.mulf %87, %arg22 : vector<2x32xf32>
      %91 = arith.mulf %86, %88 : vector<2x32xf32>
      %92 = arith.addf %90, %91 : vector<2x32xf32>
      %93 = math.tanh %92 : vector<2x32xf32>
      %94 = arith.mulf %89, %93 : vector<2x32xf32>
      %95 = arith.index_cast %74 : i32 to index
      %c0_80 = arith.constant 0 : index
      %96 = vector.load %arg18[%95, %c0_80] : memref<16x32xf32, #tpu.memory_space<vmem>>, vector<2x32xf32>
      tpu.vector_store %arg18[%95, %c0_80], %94 {strides = array<i32>} : memref<16x32xf32, #tpu.memory_space<vmem>>, vector<2x32xf32>,
      scf.yield %94, %92 : vector<2x32xf32>, vector<2x32xf32>
    }
    %c8_i32_20 = arith.constant 8 : i32
    %c0_21 = arith.constant 0 : index
    %c0_22 = arith.constant 0 : index
    %25 = vector.load %arg5[%c0_21, %c0_22] : memref<32x128xf32, #tpu.memory_space<vmem>>, vector<32x128xf32>
    %cst_23 = arith.constant 0.000000e+00 : f32
    %26 = vector.broadcast %cst_23 : f32 to vector<2x32xf32>
    %cst_24 = arith.constant 0.000000e+00 : f32
    %27 = vector.broadcast %cst_24 : f32 to vector<2x32xf32>
    %c0_i32_25 = arith.constant 0 : i32
    %c8_i32_26 = arith.constant 8 : i32
    %28 = arith.addi %c0_i32_25, %c8_i32_26 : i32
    %c1_i32_27 = arith.constant 1 : i32
    %29:2 = scf.for %arg20 = %c0_i32_25 to %28 step %c1_i32_27 iter_args(%arg21 = %26, %arg22 = %27) -> (vector<2x32xf32>, vector<2x32xf32>)  : i32 {
      %c7_i32 = arith.constant 7 : i32
      %74 = arith.subi %c7_i32, %arg20 : i32
      %c2_i32 = arith.constant 2 : i32
      %75 = arith.muli %74, %c2_i32 : i32
      %76 = arith.index_cast %75 : i32 to index
      %c0_77 = arith.constant 0 : index
      %77 = vector.load %arg17[%76, %c0_77] : memref<16x128xf32, #tpu.memory_space<vmem>>, vector<2x128xf32>
      %cst_78 = arith.constant dense<0.000000e+00> : vector<2x128xf32>
      %78 = tpu.matmul %arg21, %25, %cst_78 {dimension_numbers = #tpu.dot_dimension_numbers<[1], [0], [0], [1], [0, 0, 1, 1], [], []>} : vector<2x32xf32>, vector<32x128xf32>, vector<2x128xf32> -> vector<2x128xf32>
      %79 = arith.addf %77, %78 : vector<2x128xf32>
      %80 = math.tanh %79 : vector<2x128xf32>
      %81 = arith.negf %79 : vector<2x128xf32>
      %82 = math.exp %81 : vector<2x128xf32>
      %cst_79 = arith.constant 1.000000e+00 : f32
      %83 = vector.broadcast %cst_79 : f32 to vector<2x128xf32>
      %84 = arith.addf %83, %82 : vector<2x128xf32>
      %85 = arith.divf %83, %84 : vector<2x128xf32>
      %86 = arith.select %5, %80, %85 : vector<2x128xi1>, vector<2x128xf32>
      %87 = vector.extract_strided_slice %86 {offsets = [0, 0], sizes = [2, 32], strides = [1, 1]} : vector<2x128xf32> to vector<2x32xf32>
      %88 = vector.extract_strided_slice %86 {offsets = [0, 32], sizes = [2, 32], strides = [1, 1]} : vector<2x128xf32> to vector<2x32xf32>
      %89 = vector.extract_strided_slice %86 {offsets = [0, 64], sizes = [2, 32], strides = [1, 1]} : vector<2x128xf32> to vector<2x32xf32>
      %90 = vector.extract_strided_slice %86 {offsets = [0, 96], sizes = [2, 32], strides = [1, 1]} : vector<2x128xf32> to vector<2x32xf32>
      %91 = arith.mulf %88, %arg22 : vector<2x32xf32>
      %92 = arith.mulf %87, %89 : vector<2x32xf32>
      %93 = arith.addf %91, %92 : vector<2x32xf32>
      %94 = math.tanh %93 : vector<2x32xf32>
      %95 = arith.mulf %90, %94 : vector<2x32xf32>
      %96 = arith.index_cast %75 : i32 to index
      %c0_80 = arith.constant 0 : index
      %97 = vector.load %arg19[%96, %c0_80] : memref<16x32xf32, #tpu.memory_space<vmem>>, vector<2x32xf32>
      tpu.vector_store %arg19[%96, %c0_80], %95 {strides = array<i32>} : memref<16x32xf32, #tpu.memory_space<vmem>>, vector<2x32xf32>,
      scf.yield %95, %93 : vector<2x32xf32>, vector<2x32xf32>
    }
    %c8_i32_28 = arith.constant 8 : i32
    %c0_29 = arith.constant 0 : index
    %c0_30 = arith.constant 0 : index
    %30 = vector.load %arg7[%c0_29, %c0_30] : memref<64x128xf32, #tpu.memory_space<vmem>>, vector<64x128xf32>
    %c0_31 = arith.constant 0 : index
    %c0_32 = arith.constant 0 : index
    %31 = vector.load %arg18[%c0_31, %c0_32] : memref<16x32xf32, #tpu.memory_space<vmem>>, vector<16x32xf32>
    %32 = vector.extract_strided_slice %30 {offsets = [0, 0], sizes = [32, 128], strides = [1, 1]} : vector<64x128xf32> to vector<32x128xf32>
    %cst_33 = arith.constant dense<0.000000e+00> : vector<16x128xf32>
    %33 = tpu.matmul %31, %32, %cst_33 {dimension_numbers = #tpu.dot_dimension_numbers<[1], [0], [0], [1], [0, 0, 1, 1], [], []>} : vector<16x32xf32>, vector<32x128xf32>, vector<16x128xf32> -> vector<16x128xf32>
    %c0_34 = arith.constant 0 : index
    %c0_35 = arith.constant 0 : index
    %34 = vector.load %arg19[%c0_34, %c0_35] : memref<16x32xf32, #tpu.memory_space<vmem>>, vector<16x32xf32>
    %35 = vector.extract_strided_slice %30 {offsets = [32, 0], sizes = [32, 128], strides = [1, 1]} : vector<64x128xf32> to vector<32x128xf32>
    %cst_36 = arith.constant dense<0.000000e+00> : vector<16x128xf32>
    %36 = tpu.matmul %34, %35, %cst_36 {dimension_numbers = #tpu.dot_dimension_numbers<[1], [0], [0], [1], [0, 0, 1, 1], [], []>} : vector<16x32xf32>, vector<32x128xf32>, vector<16x128xf32> -> vector<16x128xf32>
    %37 = arith.addf %33, %36 : vector<16x128xf32>
    %c0_37 = arith.constant 0 : index
    %c0_38 = arith.constant 0 : index
    %38 = vector.load %arg9[%c0_37, %c0_38] : memref<1x128xf32, #tpu.memory_space<vmem>>, vector<1x128xf32>
    %39 = vector.broadcast %38 : vector<1x128xf32> to vector<16x128xf32>
    %40 = arith.addf %37, %39 : vector<16x128xf32>
    %c0_39 = arith.constant 0 : index
    %c0_40 = arith.constant 0 : index
    %41 = vector.load %arg16[%c0_39, %c0_40] : memref<16x128xf32, #tpu.memory_space<vmem>>, vector<16x128xf32>
    tpu.vector_store %arg16[%c0_39, %c0_40], %40 {strides = array<i32>} : memref<16x128xf32, #tpu.memory_space<vmem>>, vector<16x128xf32>,
    %c0_41 = arith.constant 0 : index
    %c0_42 = arith.constant 0 : index
    %42 = vector.load %arg10[%c0_41, %c0_42] : memref<64x128xf32, #tpu.memory_space<vmem>>, vector<64x128xf32>
    %c0_43 = arith.constant 0 : index
    %c0_44 = arith.constant 0 : index
    %43 = vector.load %arg18[%c0_43, %c0_44] : memref<16x32xf32, #tpu.memory_space<vmem>>, vector<16x32xf32>
    %44 = vector.extract_strided_slice %42 {offsets = [0, 0], sizes = [32, 128], strides = [1, 1]} : vector<64x128xf32> to vector<32x128xf32>
    %cst_45 = arith.constant dense<0.000000e+00> : vector<16x128xf32>
    %45 = tpu.matmul %43, %44, %cst_45 {dimension_numbers = #tpu.dot_dimension_numbers<[1], [0], [0], [1], [0, 0, 1, 1], [], []>} : vector<16x32xf32>, vector<32x128xf32>, vector<16x128xf32> -> vector<16x128xf32>
    %c0_46 = arith.constant 0 : index
    %c0_47 = arith.constant 0 : index
    %46 = vector.load %arg19[%c0_46, %c0_47] : memref<16x32xf32, #tpu.memory_space<vmem>>, vector<16x32xf32>
    %47 = vector.extract_strided_slice %42 {offsets = [32, 0], sizes = [32, 128], strides = [1, 1]} : vector<64x128xf32> to vector<32x128xf32>
    %cst_48 = arith.constant dense<0.000000e+00> : vector<16x128xf32>
    %48 = tpu.matmul %46, %47, %cst_48 {dimension_numbers = #tpu.dot_dimension_numbers<[1], [0], [0], [1], [0, 0, 1, 1], [], []>} : vector<16x32xf32>, vector<32x128xf32>, vector<16x128xf32> -> vector<16x128xf32>
    %49 = arith.addf %45, %48 : vector<16x128xf32>
    %c0_49 = arith.constant 0 : index
    %c0_50 = arith.constant 0 : index
    %50 = vector.load %arg12[%c0_49, %c0_50] : memref<1x128xf32, #tpu.memory_space<vmem>>, vector<1x128xf32>
    %51 = vector.broadcast %50 : vector<1x128xf32> to vector<16x128xf32>
    %52 = arith.addf %49, %51 : vector<16x128xf32>
    %c0_51 = arith.constant 0 : index
    %c0_52 = arith.constant 0 : index
    %53 = vector.load %arg17[%c0_51, %c0_52] : memref<16x128xf32, #tpu.memory_space<vmem>>, vector<16x128xf32>
    tpu.vector_store %arg17[%c0_51, %c0_52], %52 {strides = array<i32>} : memref<16x128xf32, #tpu.memory_space<vmem>>, vector<16x128xf32>,
    %c0_53 = arith.constant 0 : index
    %c0_54 = arith.constant 0 : index
    %54 = vector.load %arg8[%c0_53, %c0_54] : memref<32x128xf32, #tpu.memory_space<vmem>>, vector<32x128xf32>
    %cst_55 = arith.constant 0.000000e+00 : f32
    %55 = vector.broadcast %cst_55 : f32 to vector<2x32xf32>
    %cst_56 = arith.constant 0.000000e+00 : f32
    %56 = vector.broadcast %cst_56 : f32 to vector<2x32xf32>
    %c0_i32_57 = arith.constant 0 : i32
    %c8_i32_58 = arith.constant 8 : i32
    %57 = arith.addi %c0_i32_57, %c8_i32_58 : i32
    %c1_i32_59 = arith.constant 1 : i32
    %58:2 = scf.for %arg20 = %c0_i32_57 to %57 step %c1_i32_59 iter_args(%arg21 = %55, %arg22 = %56) -> (vector<2x32xf32>, vector<2x32xf32>)  : i32 {
      %c2_i32 = arith.constant 2 : i32
      %74 = arith.muli %arg20, %c2_i32 : i32
      %75 = arith.index_cast %74 : i32 to index
      %c0_77 = arith.constant 0 : index
      %76 = vector.load %arg16[%75, %c0_77] : memref<16x128xf32, #tpu.memory_space<vmem>>, vector<2x128xf32>
      %cst_78 = arith.constant dense<0.000000e+00> : vector<2x128xf32>
      %77 = tpu.matmul %arg21, %54, %cst_78 {dimension_numbers = #tpu.dot_dimension_numbers<[1], [0], [0], [1], [0, 0, 1, 1], [], []>} : vector<2x32xf32>, vector<32x128xf32>, vector<2x128xf32> -> vector<2x128xf32>
      %78 = arith.addf %76, %77 : vector<2x128xf32>
      %79 = math.tanh %78 : vector<2x128xf32>
      %80 = arith.negf %78 : vector<2x128xf32>
      %81 = math.exp %80 : vector<2x128xf32>
      %cst_79 = arith.constant 1.000000e+00 : f32
      %82 = vector.broadcast %cst_79 : f32 to vector<2x128xf32>
      %83 = arith.addf %82, %81 : vector<2x128xf32>
      %84 = arith.divf %82, %83 : vector<2x128xf32>
      %85 = arith.select %5, %79, %84 : vector<2x128xi1>, vector<2x128xf32>
      %86 = vector.extract_strided_slice %85 {offsets = [0, 0], sizes = [2, 32], strides = [1, 1]} : vector<2x128xf32> to vector<2x32xf32>
      %87 = vector.extract_strided_slice %85 {offsets = [0, 32], sizes = [2, 32], strides = [1, 1]} : vector<2x128xf32> to vector<2x32xf32>
      %88 = vector.extract_strided_slice %85 {offsets = [0, 64], sizes = [2, 32], strides = [1, 1]} : vector<2x128xf32> to vector<2x32xf32>
      %89 = vector.extract_strided_slice %85 {offsets = [0, 96], sizes = [2, 32], strides = [1, 1]} : vector<2x128xf32> to vector<2x32xf32>
      %90 = arith.mulf %87, %arg22 : vector<2x32xf32>
      %91 = arith.mulf %86, %88 : vector<2x32xf32>
      %92 = arith.addf %90, %91 : vector<2x32xf32>
      %93 = math.tanh %92 : vector<2x32xf32>
      %94 = arith.mulf %89, %93 : vector<2x32xf32>
      scf.yield %94, %92 : vector<2x32xf32>, vector<2x32xf32>
    }
    %c8_i32_60 = arith.constant 8 : i32
    %c0_61 = arith.constant 0 : index
    %c0_62 = arith.constant 0 : index
    %59 = vector.load %arg11[%c0_61, %c0_62] : memref<32x128xf32, #tpu.memory_space<vmem>>, vector<32x128xf32>
    %cst_63 = arith.constant 0.000000e+00 : f32
    %60 = vector.broadcast %cst_63 : f32 to vector<2x32xf32>
    %cst_64 = arith.constant 0.000000e+00 : f32
    %61 = vector.broadcast %cst_64 : f32 to vector<2x32xf32>
    %c0_i32_65 = arith.constant 0 : i32
    %c8_i32_66 = arith.constant 8 : i32
    %62 = arith.addi %c0_i32_65, %c8_i32_66 : i32
    %c1_i32_67 = arith.constant 1 : i32
    %63:2 = scf.for %arg20 = %c0_i32_65 to %62 step %c1_i32_67 iter_args(%arg21 = %60, %arg22 = %61) -> (vector<2x32xf32>, vector<2x32xf32>)  : i32 {
      %c7_i32 = arith.constant 7 : i32
      %74 = arith.subi %c7_i32, %arg20 : i32
      %c2_i32 = arith.constant 2 : i32
      %75 = arith.muli %74, %c2_i32 : i32
      %76 = arith.index_cast %75 : i32 to index
      %c0_77 = arith.constant 0 : index
      %77 = vector.load %arg17[%76, %c0_77] : memref<16x128xf32, #tpu.memory_space<vmem>>, vector<2x128xf32>
      %cst_78 = arith.constant dense<0.000000e+00> : vector<2x128xf32>
      %78 = tpu.matmul %arg21, %59, %cst_78 {dimension_numbers = #tpu.dot_dimension_numbers<[1], [0], [0], [1], [0, 0, 1, 1], [], []>} : vector<2x32xf32>, vector<32x128xf32>, vector<2x128xf32> -> vector<2x128xf32>
      %79 = arith.addf %77, %78 : vector<2x128xf32>
      %80 = math.tanh %79 : vector<2x128xf32>
      %81 = arith.negf %79 : vector<2x128xf32>
      %82 = math.exp %81 : vector<2x128xf32>
      %cst_79 = arith.constant 1.000000e+00 : f32
      %83 = vector.broadcast %cst_79 : f32 to vector<2x128xf32>
      %84 = arith.addf %83, %82 : vector<2x128xf32>
      %85 = arith.divf %83, %84 : vector<2x128xf32>
      %86 = arith.select %5, %80, %85 : vector<2x128xi1>, vector<2x128xf32>
      %87 = vector.extract_strided_slice %86 {offsets = [0, 0], sizes = [2, 32], strides = [1, 1]} : vector<2x128xf32> to vector<2x32xf32>
      %88 = vector.extract_strided_slice %86 {offsets = [0, 32], sizes = [2, 32], strides = [1, 1]} : vector<2x128xf32> to vector<2x32xf32>
      %89 = vector.extract_strided_slice %86 {offsets = [0, 64], sizes = [2, 32], strides = [1, 1]} : vector<2x128xf32> to vector<2x32xf32>
      %90 = vector.extract_strided_slice %86 {offsets = [0, 96], sizes = [2, 32], strides = [1, 1]} : vector<2x128xf32> to vector<2x32xf32>
      %91 = arith.mulf %88, %arg22 : vector<2x32xf32>
      %92 = arith.mulf %87, %89 : vector<2x32xf32>
      %93 = arith.addf %91, %92 : vector<2x32xf32>
      %94 = math.tanh %93 : vector<2x32xf32>
      %95 = arith.mulf %90, %94 : vector<2x32xf32>
      scf.yield %95, %93 : vector<2x32xf32>, vector<2x32xf32>
    }
    %c8_i32_68 = arith.constant 8 : i32
    %c0_69 = arith.constant 0 : index
    %c0_70 = arith.constant 0 : index
    %64 = vector.load %arg13[%c0_69, %c0_70] : memref<64x3xf32, #tpu.memory_space<vmem>>, vector<64x3xf32>
    %65 = vector.extract_strided_slice %64 {offsets = [0, 0], sizes = [32, 3], strides = [1, 1]} : vector<64x3xf32> to vector<32x3xf32>
    %cst_71 = arith.constant dense<0.000000e+00> : vector<2x3xf32>
    %66 = tpu.matmul %58#0, %65, %cst_71 {dimension_numbers = #tpu.dot_dimension_numbers<[1], [0], [0], [1], [0, 0, 1, 1], [], []>} : vector<2x32xf32>, vector<32x3xf32>, vector<2x3xf32> -> vector<2x3xf32>
    %67 = vector.extract_strided_slice %64 {offsets = [32, 0], sizes = [32, 3], strides = [1, 1]} : vector<64x3xf32> to vector<32x3xf32>
    %cst_72 = arith.constant dense<0.000000e+00> : vector<2x3xf32>
    %68 = tpu.matmul %63#0, %67, %cst_72 {dimension_numbers = #tpu.dot_dimension_numbers<[1], [0], [0], [1], [0, 0, 1, 1], [], []>} : vector<2x32xf32>, vector<32x3xf32>, vector<2x3xf32> -> vector<2x3xf32>
    %69 = arith.addf %66, %68 : vector<2x3xf32>
    %c0_73 = arith.constant 0 : index
    %c0_74 = arith.constant 0 : index
    %70 = vector.load %arg14[%c0_73, %c0_74] : memref<1x3xf32, #tpu.memory_space<vmem>>, vector<1x3xf32>
    %71 = vector.broadcast %70 : vector<1x3xf32> to vector<2x3xf32>
    %72 = arith.addf %69, %71 : vector<2x3xf32>
    %c0_75 = arith.constant 0 : index
    %c0_76 = arith.constant 0 : index
    %73 = vector.load %arg15[%c0_75, %c0_76] : memref<2x3xf32, #tpu.memory_space<vmem>>, vector<2x3xf32>
    tpu.vector_store %arg15[%c0_75, %c0_76], %72 {strides = array<i32>} : memref<2x3xf32, #tpu.memory_space<vmem>>, vector<2x3xf32>,
    return
  }
}

</mosaic_0001>

<llo_original>
// kernel: lstm_classifier_forward.1
$region0: #{lstm_classifier_forward.1}
  #allocation0 [shape = 'u32[]', space=smem, size = 0x4, offset = 0x4, fixed_abs, tag = 'smem constant byte address 0x4 - core index']
  #allocation1 [shape = 'u32[72,128]{1,0:T(1,128)}', space=vmem, size = 0x9000, scoped, tag = 'internal scratch']
  #allocation2 [shape = 'f32[16,128]{1,0:T(8,128)}', space=vmem, size = 0x2000, scoped, tag = 'scratch operand']
  #allocation3 [shape = 'f32[16,128]{1,0:T(8,128)}', space=vmem, size = 0x2000, scoped, tag = 'scratch operand']
  #allocation4 [shape = 'f32[16,32]{1,0:T(8,128)}', space=vmem, size = 0x2000, scoped, tag = 'scratch operand']
  #allocation5 [shape = 'f32[16,32]{1,0:T(8,128)}', space=vmem, size = 0x2000, scoped, tag = 'scratch operand']
  %s0 = inlined_call_operand.vmem [shape: f32[16,16], index: 0, kind: input, shape index: {}]
  %s1 = inlined_call_operand.vmem [shape: f32[16,128], index: 1, kind: input, shape index: {}]
  %s2 = inlined_call_operand.vmem [shape: f32[32,128], index: 2, kind: input, shape index: {}]
  %s3 = inlined_call_operand.vmem [shape: f32[1,128], index: 3, kind: input, shape index: {}]
  %s4 = inlined_call_operand.vmem [shape: f32[16,128], index: 4, kind: input, shape index: {}]
  %s5 = inlined_call_operand.vmem [shape: f32[32,128], index: 5, kind: input, shape index: {}]
  %s6 = inlined_call_operand.vmem [shape: f32[1,128], index: 6, kind: input, shape index: {}]
  %s7 = inlined_call_operand.vmem [shape: f32[64,128], index: 7, kind: input, shape index: {}]
  %s8 = inlined_call_operand.vmem [shape: f32[32,128], index: 8, kind: input, shape index: {}]
  %s9 = inlined_call_operand.vmem [shape: f32[1,128], index: 9, kind: input, shape index: {}]
  %s10 = inlined_call_operand.vmem [shape: f32[64,128], index: 10, kind: input, shape index: {}]
  %s11 = inlined_call_operand.vmem [shape: f32[32,128], index: 11, kind: input, shape index: {}]
  %s12 = inlined_call_operand.vmem [shape: f32[1,128], index: 12, kind: input, shape index: {}]
  %s13 = inlined_call_operand.vmem [shape: f32[64,3], index: 13, kind: input, shape index: {}]
  %s14 = inlined_call_operand.vmem [shape: f32[1,3], index: 14, kind: input, shape index: {}]
  %s15 = inlined_call_operand.hbm [shape: f32[2,3], index: 15, kind: output, shape index: {}]
  %s16 = sld [smem:[#allocation0]]
  $region98: #{lstm_classifier_forward.1} parent=0
    _
  %s18 = ssub.s32 1, %s16
  %s19 = scalar_select 0, %s18, %s16
  $region1: #{lstm_classifier_forward.1} parent=0
    #allocation6 [shape = 'u8[1024]{0}', space=vmem, size = 0x400, scoped, tag = 'output window, operand 0, single buffered']
    #allocation7 [shape = 's32[1]{0}', space=sflag, size = 0x4, scoped, tag = 'scoped memory for lstm_classifier_forward.1']
    %20 = vsyncpa [#allocation7], 0
    // Predicated region
    $region2: #{lstm_classifier_forward.1} parent=1 // pred_check
      _
    $region3: #{lstm_classifier_forward.1} parent=1 // pred_check_branch
      %22 = sbr.rel (0) target = $region5
    $region4: #{lstm_classifier_forward.1} parent=1 // pred_region
      _
    $region5: #{lstm_classifier_forward.1} parent=1 // pred_fallthru
      _
    // Predicated region
    $region6: #{lstm_classifier_forward.1} parent=1 // pred_check
      _
    $region7: #{lstm_classifier_forward.1} parent=1 // pred_check_branch
      %24 = sbr.rel (0) target = $region9
    $region8: #{lstm_classifier_forward.1} parent=1 // pred_region
      _
    $region9: #{lstm_classifier_forward.1} parent=1 // pred_fallthru
      _
    // Predicated region
    $region10: #{lstm_classifier_forward.1} parent=1 // pred_check
      _
    $region11: #{lstm_classifier_forward.1} parent=1 // pred_check_branch
      %26 = sbr.rel (0) target = $region13
    $region12: #{lstm_classifier_forward.1} parent=1 // pred_region
      _
    $region13: #{lstm_classifier_forward.1} parent=1 // pred_fallthru
      _
    // Predicated region
    $region14: #{lstm_classifier_forward.1} parent=1 // pred_check
      _
    $region15: #{lstm_classifier_forward.1} parent=1 // pred_check_branch
      %28 = sbr.rel (0) target = $region17
    $region16: #{lstm_classifier_forward.1} parent=1 // pred_region
      _
    $region17: #{lstm_classifier_forward.1} parent=1 // pred_fallthru
      _
    // Predicated region
    $region18: #{lstm_classifier_forward.1} parent=1 // pred_check
      _
    $region19: #{lstm_classifier_forward.1} parent=1 // pred_check_branch
      %30 = sbr.rel (0) target = $region21
    $region20: #{lstm_classifier_forward.1} parent=1 // pred_region
      _
    $region21: #{lstm_classifier_forward.1} parent=1 // pred_fallthru
      _
    // Predicated region
    $region22: #{lstm_classifier_forward.1} parent=1 // pred_check
      _
    $region23: #{lstm_classifier_forward.1} parent=1 // pred_check_branch
      %32 = sbr.rel (0) target = $region25
    $region24: #{lstm_classifier_forward.1} parent=1 // pred_region
      _
    $region25: #{lstm_classifier_forward.1} parent=1 // pred_fallthru
      _
    // Predicated region
    $region26: #{lstm_classifier_forward.1} parent=1 // pred_check
      _
    $region27: #{lstm_classifier_forward.1} parent=1 // pred_check_branch
      %34 = sbr.rel (0) target = $region29
    $region28: #{lstm_classifier_forward.1} parent=1 // pred_region
      _
    $region29: #{lstm_classifier_forward.1} parent=1 // pred_fallthru
      _
    // Predicated region
    $region30: #{lstm_classifier_forward.1} parent=1 // pred_check
      _
    $region31: #{lstm_classifier_forward.1} parent=1 // pred_check_branch
      %36 = sbr.rel (0) target = $region33
    $region32: #{lstm_classifier_forward.1} parent=1 // pred_region
      _
    $region33: #{lstm_classifier_forward.1} parent=1 // pred_fallthru
      _
    // Predicated region
    $region34: #{lstm_classifier_forward.1} parent=1 // pred_check
      _
    $region35: #{lstm_classifier_forward.1} parent=1 // pred_check_branch
      %38 = sbr.rel (0) target = $region37
    $region36: #{lstm_classifier_forward.1} parent=1 // pred_region
      _
    $region37: #{lstm_classifier_forward.1} parent=1 // pred_fallthru
      _
    // Predicated region
    $region38: #{lstm_classifier_forward.1} parent=1 // pred_check
      _
    $region39: #{lstm_classifier_forward.1} parent=1 // pred_check_branch
      %40 = sbr.rel (0) target = $region41
    $region40: #{lstm_classifier_forward.1} parent=1 // pred_region
      _
    $region41: #{lstm_classifier_forward.1} parent=1 // pred_fallthru
      _
    // Predicated region
    $region42: #{lstm_classifier_forward.1} parent=1 // pred_check
      _
    $region43: #{lstm_classifier_forward.1} parent=1 // pred_check_branch
      %42 = sbr.rel (0) target = $region45
    $region44: #{lstm_classifier_forward.1} parent=1 // pred_region
      _
    $region45: #{lstm_classifier_forward.1} parent=1 // pred_fallthru
      _
    // Predicated region
    $region46: #{lstm_classifier_forward.1} parent=1 // pred_check
      _
    $region47: #{lstm_classifier_forward.1} parent=1 // pred_check_branch
      %44 = sbr.rel (0) target = $region49
    $region48: #{lstm_classifier_forward.1} parent=1 // pred_region
      _
    $region49: #{lstm_classifier_forward.1} parent=1 // pred_fallthru
      _
    // Predicated region
    $region50: #{lstm_classifier_forward.1} parent=1 // pred_check
      _
    $region51: #{lstm_classifier_forward.1} parent=1 // pred_check_branch
      %46 = sbr.rel (0) target = $region53
    $region52: #{lstm_classifier_forward.1} parent=1 // pred_region
      _
    $region53: #{lstm_classifier_forward.1} parent=1 // pred_fallthru
      _
    // Predicated region
    $region54: #{lstm_classifier_forward.1} parent=1 // pred_check
      _
    $region55: #{lstm_classifier_forward.1} parent=1 // pred_check_branch
      %48 = sbr.rel (0) target = $region57
    $region56: #{lstm_classifier_forward.1} parent=1 // pred_region
      _
    $region57: #{lstm_classifier_forward.1} parent=1 // pred_fallthru
      _
    // Predicated region
    $region58: #{lstm_classifier_forward.1} parent=1 // pred_check
      _
    $region59: #{lstm_classifier_forward.1} parent=1 // pred_check_branch
      %50 = sbr.rel (0) target = $region61
    $region60: #{lstm_classifier_forward.1} parent=1 // pred_region
      _
    $region61: #{lstm_classifier_forward.1} parent=1 // pred_fallthru
      _
    %v51 = vlaneseq
    %v52 = vand.u32 %v51, 127
    %vm53 = vcmp.ge.s32.totalorder %v52, 64
    %vm54 = vcmp.lt.s32.totalorder %v52, 96
    %vm55 = vmand %vm53, %vm54
    %v56 = vld [vmem:[%s0] sm:$0xff]
    %v57 = vld [vmem:[%s0 + $0x8] sm:$0xff]
    %v58 = vld [vmem:[%s1] sm:$0xff]
    %v59 = vld [vmem:[%s1 + $0x8] sm:$0xff]
    %v60 = vld [vmem:[%s3] sm:$0x1]
    %v62 = vperm.slane %v60, 0
    %vm64 = vcmask 130048
    %v66 = vsel %vm64, %v56, 0
    %v69 = vsel %vm64, %v57, 0
    %71 = vmatpush.msra.mxu0 0.0
    %72 = vmatpush.msra.mxu0 0.0
    %73 = vmatpush.msra.mxu0 0.0
    %74 = vmatpush.msra.mxu0 0.0
    %75 = vmatpush.msra.mxu0 0.0
    %76 = vmatpush.msra.mxu0 0.0
    %77 = vmatpush.msra.mxu0 0.0
    %78 = vmatpush.msra.mxu0 0.0
    %79 = vmatpush.msra.mxu0 0.0
    %80 = vmatpush.msra.mxu0 0.0
    %81 = vmatpush.msra.mxu0 0.0
    %82 = vmatpush.msra.mxu0 0.0
    %83 = vmatpush.msra.mxu0 0.0
    %84 = vmatpush.msra.mxu0 0.0
    %85 = vmatpush.msra.mxu0 %v59
    %86 = vmatpush.msra.mxu0 %v58
    %87 = vmatmul.f32.gmra.mxu0 %v66
    %v88 = vpop.f32.mrf.mxu0
    %v89 = vadd.f32 %v62, %v88
    %90 = vmatmul.f32.gmra.mxu0 %v69
    %v91 = vpop.f32.mrf.mxu0
    %v92 = vadd.f32 %v62, %v91
    %93 = vdwg.mxu0
    %94 = vst [vmem:[#allocation2] sm:$0xff] %v89
    %95 = vst [vmem:[#allocation2 + $0x8] sm:$0xff] %v92
    %v96 = vld [vmem:[%s0] sm:$0xff]
    %v97 = vld [vmem:[%s0 + $0x8] sm:$0xff]
    %v98 = vld [vmem:[%s4] sm:$0xff]
    %v99 = vld [vmem:[%s4 + $0x8] sm:$0xff]
    %v100 = vld [vmem:[%s6] sm:$0x1]
    %v102 = vperm.slane %v100, 0
    %v105 = vsel %vm64, %v96, 0
    %v108 = vsel %vm64, %v97, 0
    %110 = vmatpush.msra.mxu0 0.0
    %111 = vmatpush.msra.mxu0 0.0
    %112 = vmatpush.msra.mxu0 0.0
    %113 = vmatpush.msra.mxu0 0.0
    %114 = vmatpush.msra.mxu0 0.0
    %115 = vmatpush.msra.mxu0 0.0
    %116 = vmatpush.msra.mxu0 0.0
    %117 = vmatpush.msra.mxu0 0.0
    %118 = vmatpush.msra.mxu0 0.0
    %119 = vmatpush.msra.mxu0 0.0
    %120 = vmatpush.msra.mxu0 0.0
    %121 = vmatpush.msra.mxu0 0.0
    %122 = vmatpush.msra.mxu0 0.0
    %123 = vmatpush.msra.mxu0 0.0
    %124 = vmatpush.msra.mxu0 %v99
    %125 = vmatpush.msra.mxu0 %v98
    %126 = vmatmul.f32.gmra.mxu0 %v105
    %v127 = vpop.f32.mrf.mxu0
    %v128 = vadd.f32 %v102, %v127
    %129 = vmatmul.f32.gmra.mxu0 %v108
    %v130 = vpop.f32.mrf.mxu0
    %v131 = vadd.f32 %v102, %v130
    %132 = vdwg.mxu0
    %133 = vst [vmem:[#allocation3] sm:$0xff] %v128
    %134 = vst [vmem:[#allocation3 + $0x8] sm:$0xff] %v131
    %v135 = vld [vmem:[%s2] sm:$0xff]
    %v136 = vld [vmem:[%s2 + $0x8] sm:$0xff]
    %v137 = vld [vmem:[%s2 + $0x10] sm:$0xff]
    %v138 = vld [vmem:[%s2 + $0x18] sm:$0xff]
    loop: start=0, step=1, limit=8
    $region62: #{lstm_classifier_forward.1} parent=1 // loop_pre_header
      _
    $region63: #{lstm_classifier_forward.1} parent=1 // loop_header
      %s140 = sphi 0, %s144
      %p141 = scmp.ge.s32.totalorder %s140, 8
      %v145 = vphi 0.0, %v214
      %v146 = vphi 0.0, %v208
    $region64: #{lstm_classifier_forward.1} parent=1 // loop_header_branch
      %143 = sbr.rel (%p141) target = $region68
    $region65: #{lstm_classifier_forward.1} parent=1 // loop_body
      %s147 = smul.u32 %s140, 2
      %s148 = scalar_lea.vmem [#allocation2], %s147
      %v149 = vld [vmem:[%s148] sm:$0x3]
      %151 = vrot.lane.b32.xlu0 %v145, 32
      %v152 = vpop.permute.xlu0 %151
      %vm153 = vcmask 261120
      %v154 = vsel %vm153, %v152, 0
      %156 = vmatpush.msra.mxu0 0.0
      %157 = vmatpush.msra.mxu0 0.0
      %158 = vmatpush.msra.mxu0 0.0
      %159 = vmatpush.msra.mxu0 0.0
      %160 = vmatpush.msra.mxu0 0.0
      %161 = vmatpush.msra.mxu0 0.0
      %162 = vmatpush.msra.mxu0 0.0
      %163 = vmatpush.msra.mxu0 0.0
      %164 = vmatpush.msra.mxu0 0.0
      %165 = vmatpush.msra.mxu0 0.0
      %166 = vmatpush.msra.mxu0 0.0
      %167 = vmatpush.msra.mxu0 0.0
      %168 = vmatpush.msra.mxu0 %v138
      %169 = vmatpush.msra.mxu0 %v137
      %170 = vmatpush.msra.mxu0 %v136
      %171 = vmatpush.msra.mxu0 %v135
      %172 = vmatmul.f32.gmra.mxu0 %v154
      %v173 = vpop.f32.mrf.mxu0
      %v174 = vadd.f32 0.0, %v173
      %175 = vdwg.mxu0
      %v176 = vadd.f32 %v149, %v174
      %v177 = vtanh.pop %v176
      %v178 = vxor.u32 %v176, 2147483648
      %v179 = vmul.f32 %v178, 1.442695
      %v180 = vpow.pop %v179
      %v181 = vadd.f32 %v180, 1.0
      %v182 = vrcp.pop %v181
      %v183 = vmul.f32 %v181, %v182
      %v184 = vsub.f32 1.0, %v183
      %v185 = vmul.f32 %v182, %v184
      %v186 = vadd.f32 %v182, %v185
      %vm187 = vweird.f32 %v181
      %vm188 = vweird.f32 %v182
      %vm189 = vmor %vm187, %vm188
      %v190 = vsel %vm189, %v182, %v186
      %v191 = vand.u32 2147483647, %v181
      %vm192 = vcmp.eq.f32.partialorder %v191, 8.507059e+37
      %v193 = vand.u32 %v181, 2147483648
      %v194 = vor.u32 1.1754944e-38, %v193
      %v195 = vsel %vm192, %v194, %v190
      %v196 = vmul.f32 1.0, %v195
      %v197 = vsel %vm55, %v177, %v196
      %v198 = vmul.f32 %v197, %v146
      %200 = vrot.lane.b32.xlu0 %v197, 64
      %v201 = vpop.permute.xlu0 %200
      %v203 = vmul.f32 %v197, %v201
      %205 = vrot.lane.b32.xlu0 %v203, 32
      %v206 = vpop.permute.xlu0 %205
      %v208 = vadd.f32 %v198, %v206
      %v209 = vtanh.pop %v208
      %211 = vrot.lane.b32.xlu0 %v209, 64
      %v212 = vpop.permute.xlu0 %211
      %v214 = vmul.f32 %v197, %v212
      %216 = vrot.lane.b32.xlu0 %v214, 32
      %v217 = vpop.permute.xlu0 %216
      %s219 = scalar_lea.vmem [#allocation4], %s147
      %vm220 = vcmask 254976
      %221 = vst.msk [vmem:[%s219] sm:$0x3] %vm220, %v217
    $region66: #{lstm_classifier_forward.1} parent=1 // loop_footer
      %s144 = sadd.s32 1, %s140
    $region67: #{lstm_classifier_forward.1} parent=1 // loop_footer_branch
      %139 = sbr.rel target = $region63
    $region68: #{lstm_classifier_forward.1} parent=1 // loop_exit
      _
    %v222 = vld [vmem:[%s5] sm:$0xff]
    %v223 = vld [vmem:[%s5 + $0x8] sm:$0xff]
    %v224 = vld [vmem:[%s5 + $0x10] sm:$0xff]
    %v225 = vld [vmem:[%s5 + $0x18] sm:$0xff]
    loop: start=0, step=1, limit=8
    $region69: #{lstm_classifier_forward.1} parent=1 // loop_pre_header
      _
    $region70: #{lstm_classifier_forward.1} parent=1 // loop_header
      %s227 = sphi 0, %s231
      %p228 = scmp.ge.s32.totalorder %s227, 8
      %v232 = vphi 0.0, %v302
      %v233 = vphi 0.0, %v296
    $region71: #{lstm_classifier_forward.1} parent=1 // loop_header_branch
      %230 = sbr.rel (%p228) target = $region75
    $region72: #{lstm_classifier_forward.1} parent=1 // loop_body
      %s234 = ssub.s32 7, %s227
      %s235 = smul.u32 %s234, 2
      %s236 = scalar_lea.vmem [#allocation3], %s235
      %v237 = vld [vmem:[%s236] sm:$0x3]
      %239 = vrot.lane.b32.xlu0 %v232, 32
      %v240 = vpop.permute.xlu0 %239
      %vm241 = vcmask 261120
      %v242 = vsel %vm241, %v240, 0
      %244 = vmatpush.msra.mxu0 0.0
      %245 = vmatpush.msra.mxu0 0.0
      %246 = vmatpush.msra.mxu0 0.0
      %247 = vmatpush.msra.mxu0 0.0
      %248 = vmatpush.msra.mxu0 0.0
      %249 = vmatpush.msra.mxu0 0.0
      %250 = vmatpush.msra.mxu0 0.0
      %251 = vmatpush.msra.mxu0 0.0
      %252 = vmatpush.msra.mxu0 0.0
      %253 = vmatpush.msra.mxu0 0.0
      %254 = vmatpush.msra.mxu0 0.0
      %255 = vmatpush.msra.mxu0 0.0
      %256 = vmatpush.msra.mxu0 %v225
      %257 = vmatpush.msra.mxu0 %v224
      %258 = vmatpush.msra.mxu0 %v223
      %259 = vmatpush.msra.mxu0 %v222
      %260 = vmatmul.f32.gmra.mxu0 %v242
      %v261 = vpop.f32.mrf.mxu0
      %v262 = vadd.f32 0.0, %v261
      %263 = vdwg.mxu0
      %v264 = vadd.f32 %v237, %v262
      %v265 = vtanh.pop %v264
      %v266 = vxor.u32 %v264, 2147483648
      %v267 = vmul.f32 %v266, 1.442695
      %v268 = vpow.pop %v267
      %v269 = vadd.f32 %v268, 1.0
      %v270 = vrcp.pop %v269
      %v271 = vmul.f32 %v269, %v270
      %v272 = vsub.f32 1.0, %v271
      %v273 = vmul.f32 %v270, %v272
      %v274 = vadd.f32 %v270, %v273
      %vm275 = vweird.f32 %v269
      %vm276 = vweird.f32 %v270
      %vm277 = vmor %vm275, %vm276
      %v278 = vsel %vm277, %v270, %v274
      %v279 = vand.u32 2147483647, %v269
      %vm280 = vcmp.eq.f32.partialorder %v279, 8.507059e+37
      %v281 = vand.u32 %v269, 2147483648
      %v282 = vor.u32 1.1754944e-38, %v281
      %v283 = vsel %vm280, %v282, %v278
      %v284 = vmul.f32 1.0, %v283
      %v285 = vsel %vm55, %v265, %v284
      %v286 = vmul.f32 %v285, %v233
      %288 = vrot.lane.b32.xlu0 %v285, 64
      %v289 = vpop.permute.xlu0 %288
      %v291 = vmul.f32 %v285, %v289
      %293 = vrot.lane.b32.xlu0 %v291, 32
      %v294 = vpop.permute.xlu0 %293
      %v296 = vadd.f32 %v286, %v294
      %v297 = vtanh.pop %v296
      %299 = vrot.lane.b32.xlu0 %v297, 64
      %v300 = vpop.permute.xlu0 %299
      %v302 = vmul.f32 %v285, %v300
      %304 = vrot.lane.b32.xlu0 %v302, 32
      %v305 = vpop.permute.xlu0 %304
      %s307 = scalar_lea.vmem [#allocation5], %s235
      %vm308 = vcmask 254976
      %309 = vst.msk [vmem:[%s307] sm:$0x3] %vm308, %v305
    $region73: #{lstm_classifier_forward.1} parent=1 // loop_footer
      %s231 = sadd.s32 1, %s227
    $region74: #{lstm_classifier_forward.1} parent=1 // loop_footer_branch
      %226 = sbr.rel target = $region70
    $region75: #{lstm_classifier_forward.1} parent=1 // loop_exit
      _
    %v310 = vld [vmem:[%s7] sm:$0xff]
    %v311 = vld [vmem:[%s7 + $0x8] sm:$0xff]
    %v312 = vld [vmem:[%s7 + $0x10] sm:$0xff]
    %v313 = vld [vmem:[%s7 + $0x18] sm:$0xff]
    %v314 = vld [vmem:[%s7 + $0x20] sm:$0xff]
    %v315 = vld [vmem:[%s7 + $0x28] sm:$0xff]
    %v316 = vld [vmem:[%s7 + $0x30] sm:$0xff]
    %v317 = vld [vmem:[%s7 + $0x38] sm:$0xff]
    %v318 = vld [vmem:[#allocation4] sm:$0xff]
    %v319 = vld [vmem:[#allocation4 + $0x8] sm:$0xff]
    %v320 = vld [vmem:[#allocation5] sm:$0xff]
    %v321 = vld [vmem:[#allocation5 + $0x8] sm:$0xff]
    %vm322 = vcmask 261120
    %v324 = vsel %vm322, %v320, 0
    %v327 = vsel %vm322, %v321, 0
    %329 = vmatpush.msra.mxu0 0.0
    %330 = vmatpush.msra.mxu0 0.0
    %331 = vmatpush.msra.mxu0 0.0
    %332 = vmatpush.msra.mxu0 0.0
    %333 = vmatpush.msra.mxu0 0.0
    %334 = vmatpush.msra.mxu0 0.0
    %335 = vmatpush.msra.mxu0 0.0
    %336 = vmatpush.msra.mxu0 0.0
    %337 = vmatpush.msra.mxu0 0.0
    %338 = vmatpush.msra.mxu0 0.0
    %339 = vmatpush.msra.mxu0 0.0
    %340 = vmatpush.msra.mxu0 0.0
    %341 = vmatpush.msra.mxu0 %v317
    %342 = vmatpush.msra.mxu0 %v316
    %343 = vmatpush.msra.mxu0 %v315
    %344 = vmatpush.msra.mxu0 %v314
    %345 = vmatmul.f32.gmra.mxu0 %v324
    %v346 = vpop.f32.mrf.mxu0
    %v347 = vadd.f32 0.0, %v346
    %348 = vmatmul.f32.gmra.mxu0 %v327
    %v349 = vpop.f32.mrf.mxu0
    %v350 = vadd.f32 0.0, %v349
    %351 = vdwg.mxu0
    %v353 = vsel %vm322, %v318, 0
    %v356 = vsel %vm322, %v319, 0
    %358 = vmatpush.msra.mxu0 0.0
    %359 = vmatpush.msra.mxu0 0.0
    %360 = vmatpush.msra.mxu0 0.0
    %361 = vmatpush.msra.mxu0 0.0
    %362 = vmatpush.msra.mxu0 0.0
    %363 = vmatpush.msra.mxu0 0.0
    %364 = vmatpush.msra.mxu0 0.0
    %365 = vmatpush.msra.mxu0 0.0
    %366 = vmatpush.msra.mxu0 0.0
    %367 = vmatpush.msra.mxu0 0.0
    %368 = vmatpush.msra.mxu0 0.0
    %369 = vmatpush.msra.mxu0 0.0
    %370 = vmatpush.msra.mxu0 %v313
    %371 = vmatpush.msra.mxu0 %v312
    %372 = vmatpush.msra.mxu0 %v311
    %373 = vmatpush.msra.mxu0 %v310
    %374 = vmatmul.f32.gmra.mxu0 %v353
    %v375 = vpop.f32.mrf.mxu0
    %v376 = vadd.f32 %v347, %v375
    %377 = vmatmul.f32.gmra.mxu0 %v356
    %v378 = vpop.f32.mrf.mxu0
    %v379 = vadd.f32 %v350, %v378
    %380 = vdwg.mxu0
    %v381 = vld [vmem:[%s9] sm:$0x1]
    %v383 = vperm.slane %v381, 0
    %v385 = vadd.f32 %v376, %v383
    %v386 = vadd.f32 %v379, %v383
    %387 = vst [vmem:[#allocation2] sm:$0xff] %v385
    %388 = vst [vmem:[#allocation2 + $0x8] sm:$0xff] %v386
    %v389 = vld [vmem:[%s10] sm:$0xff]
    %v390 = vld [vmem:[%s10 + $0x8] sm:$0xff]
    %v391 = vld [vmem:[%s10 + $0x10] sm:$0xff]
    %v392 = vld [vmem:[%s10 + $0x18] sm:$0xff]
    %v393 = vld [vmem:[%s10 + $0x20] sm:$0xff]
    %v394 = vld [vmem:[%s10 + $0x28] sm:$0xff]
    %v395 = vld [vmem:[%s10 + $0x30] sm:$0xff]
    %v396 = vld [vmem:[%s10 + $0x38] sm:$0xff]
    %v397 = vld [vmem:[#allocation4] sm:$0xff]
    %v398 = vld [vmem:[#allocation4 + $0x8] sm:$0xff]
    %v399 = vld [vmem:[#allocation5] sm:$0xff]
    %v400 = vld [vmem:[#allocation5 + $0x8] sm:$0xff]
    %v402 = vsel %vm322, %v399, 0
    %v405 = vsel %vm322, %v400, 0
    %407 = vmatpush.msra.mxu0 0.0
    %408 = vmatpush.msra.mxu0 0.0
    %409 = vmatpush.msra.mxu0 0.0
    %410 = vmatpush.msra.mxu0 0.0
    %411 = vmatpush.msra.mxu0 0.0
    %412 = vmatpush.msra.mxu0 0.0
    %413 = vmatpush.msra.mxu0 0.0
    %414 = vmatpush.msra.mxu0 0.0
    %415 = vmatpush.msra.mxu0 0.0
    %416 = vmatpush.msra.mxu0 0.0
    %417 = vmatpush.msra.mxu0 0.0
    %418 = vmatpush.msra.mxu0 0.0
    %419 = vmatpush.msra.mxu0 %v396
    %420 = vmatpush.msra.mxu0 %v395
    %421 = vmatpush.msra.mxu0 %v394
    %422 = vmatpush.msra.mxu0 %v393
    %423 = vmatmul.f32.gmra.mxu0 %v402
    %v424 = vpop.f32.mrf.mxu0
    %v425 = vadd.f32 0.0, %v424
    %426 = vmatmul.f32.gmra.mxu0 %v405
    %v427 = vpop.f32.mrf.mxu0
    %v428 = vadd.f32 0.0, %v427
    %429 = vdwg.mxu0
    %v431 = vsel %vm322, %v397, 0
    %v434 = vsel %vm322, %v398, 0
    %436 = vmatpush.msra.mxu0 0.0
    %437 = vmatpush.msra.mxu0 0.0
    %438 = vmatpush.msra.mxu0 0.0
    %439 = vmatpush.msra.mxu0 0.0
    %440 = vmatpush.msra.mxu0 0.0
    %441 = vmatpush.msra.mxu0 0.0
    %442 = vmatpush.msra.mxu0 0.0
    %443 = vmatpush.msra.mxu0 0.0
    %444 = vmatpush.msra.mxu0 0.0
    %445 = vmatpush.msra.mxu0 0.0
    %446 = vmatpush.msra.mxu0 0.0
    %447 = vmatpush.msra.mxu0 0.0
    %448 = vmatpush.msra.mxu0 %v392
    %449 = vmatpush.msra.mxu0 %v391
    %450 = vmatpush.msra.mxu0 %v390
    %451 = vmatpush.msra.mxu0 %v389
    %452 = vmatmul.f32.gmra.mxu0 %v431
    %v453 = vpop.f32.mrf.mxu0
    %v454 = vadd.f32 %v425, %v453
    %455 = vmatmul.f32.gmra.mxu0 %v434
    %v456 = vpop.f32.mrf.mxu0
    %v457 = vadd.f32 %v428, %v456
    %458 = vdwg.mxu0
    %v459 = vld [vmem:[%s12] sm:$0x1]
    %v461 = vperm.slane %v459, 0
    %v463 = vadd.f32 %v454, %v461
    %v464 = vadd.f32 %v457, %v461
    %465 = vst [vmem:[#allocation3] sm:$0xff] %v463
    %466 = vst [vmem:[#allocation3 + $0x8] sm:$0xff] %v464
    %v467 = vld [vmem:[%s8] sm:$0xff]
    %v468 = vld [vmem:[%s8 + $0x8] sm:$0xff]
    %v469 = vld [vmem:[%s8 + $0x10] sm:$0xff]
    %v470 = vld [vmem:[%s8 + $0x18] sm:$0xff]
    loop: start=0, step=1, limit=8
    $region76: #{lstm_classifier_forward.1} parent=1 // loop_pre_header
      _
    $region77: #{lstm_classifier_forward.1} parent=1 // loop_header
      %s472 = sphi 0, %s476
      %p473 = scmp.ge.s32.totalorder %s472, 8
      %v477 = vphi 0.0, %v545
      %v478 = vphi 0.0, %v539
    $region78: #{lstm_classifier_forward.1} parent=1 // loop_header_branch
      %475 = sbr.rel (%p473) target = $region82
    $region79: #{lstm_classifier_forward.1} parent=1 // loop_body
      %s479 = smul.u32 %s472, 2
      %s480 = scalar_lea.vmem [#allocation2], %s479
      %v481 = vld [vmem:[%s480] sm:$0x3]
      %483 = vrot.lane.b32.xlu0 %v477, 32
      %v484 = vpop.permute.xlu0 %483
      %v485 = vsel %vm322, %v484, 0
      %487 = vmatpush.msra.mxu0 0.0
      %488 = vmatpush.msra.mxu0 0.0
      %489 = vmatpush.msra.mxu0 0.0
      %490 = vmatpush.msra.mxu0 0.0
      %491 = vmatpush.msra.mxu0 0.0
      %492 = vmatpush.msra.mxu0 0.0
      %493 = vmatpush.msra.mxu0 0.0
      %494 = vmatpush.msra.mxu0 0.0
      %495 = vmatpush.msra.mxu0 0.0
      %496 = vmatpush.msra.mxu0 0.0
      %497 = vmatpush.msra.mxu0 0.0
      %498 = vmatpush.msra.mxu0 0.0
      %499 = vmatpush.msra.mxu0 %v470
      %500 = vmatpush.msra.mxu0 %v469
      %501 = vmatpush.msra.mxu0 %v468
      %502 = vmatpush.msra.mxu0 %v467
      %503 = vmatmul.f32.gmra.mxu0 %v485
      %v504 = vpop.f32.mrf.mxu0
      %v505 = vadd.f32 0.0, %v504
      %506 = vdwg.mxu0
      %v507 = vadd.f32 %v481, %v505
      %v508 = vtanh.pop %v507
      %v509 = vxor.u32 %v507, 2147483648
      %v510 = vmul.f32 %v509, 1.442695
      %v511 = vpow.pop %v510
      %v512 = vadd.f32 %v511, 1.0
      %v513 = vrcp.pop %v512
      %v514 = vmul.f32 %v512, %v513
      %v515 = vsub.f32 1.0, %v514
      %v516 = vmul.f32 %v513, %v515
      %v517 = vadd.f32 %v513, %v516
      %vm518 = vweird.f32 %v512
      %vm519 = vweird.f32 %v513
      %vm520 = vmor %vm518, %vm519
      %v521 = vsel %vm520, %v513, %v517
      %v522 = vand.u32 2147483647, %v512
      %vm523 = vcmp.eq.f32.partialorder %v522, 8.507059e+37
      %v524 = vand.u32 %v512, 2147483648
      %v525 = vor.u32 1.1754944e-38, %v524
      %v526 = vsel %vm523, %v525, %v521
      %v527 = vmul.f32 1.0, %v526
      %v528 = vsel %vm55, %v508, %v527
      %v529 = vmul.f32 %v528, %v478
      %531 = vrot.lane.b32.xlu0 %v528, 64
      %v532 = vpop.permute.xlu0 %531
      %v534 = vmul.f32 %v528, %v532
      %536 = vrot.lane.b32.xlu0 %v534, 32
      %v537 = vpop.permute.xlu0 %536
      %v539 = vadd.f32 %v529, %v537
      %v540 = vtanh.pop %v539
      %542 = vrot.lane.b32.xlu0 %v540, 64
      %v543 = vpop.permute.xlu0 %542
      %v545 = vmul.f32 %v528, %v543
    $region80: #{lstm_classifier_forward.1} parent=1 // loop_footer
      %s476 = sadd.s32 1, %s472
    $region81: #{lstm_classifier_forward.1} parent=1 // loop_footer_branch
      %471 = sbr.rel target = $region77
    $region82: #{lstm_classifier_forward.1} parent=1 // loop_exit
      _
    %v546 = vld [vmem:[%s11] sm:$0xff]
    %v547 = vld [vmem:[%s11 + $0x8] sm:$0xff]
    %v548 = vld [vmem:[%s11 + $0x10] sm:$0xff]
    %v549 = vld [vmem:[%s11 + $0x18] sm:$0xff]
    loop: start=0, step=1, limit=8
    $region83: #{lstm_classifier_forward.1} parent=1 // loop_pre_header
      _
    $region84: #{lstm_classifier_forward.1} parent=1 // loop_header
      %s551 = sphi 0, %s555
      %p552 = scmp.ge.s32.totalorder %s551, 8
      %v556 = vphi 0.0, %v625
      %v557 = vphi 0.0, %v619
    $region85: #{lstm_classifier_forward.1} parent=1 // loop_header_branch
      %554 = sbr.rel (%p552) target = $region89
    $region86: #{lstm_classifier_forward.1} parent=1 // loop_body
      %s558 = ssub.s32 7, %s551
      %s559 = smul.u32 %s558, 2
      %s560 = scalar_lea.vmem [#allocation3], %s559
      %v561 = vld [vmem:[%s560] sm:$0x3]
      %563 = vrot.lane.b32.xlu0 %v556, 32
      %v564 = vpop.permute.xlu0 %563
      %v565 = vsel %vm322, %v564, 0
      %567 = vmatpush.msra.mxu0 0.0
      %568 = vmatpush.msra.mxu0 0.0
      %569 = vmatpush.msra.mxu0 0.0
      %570 = vmatpush.msra.mxu0 0.0
      %571 = vmatpush.msra.mxu0 0.0
      %572 = vmatpush.msra.mxu0 0.0
      %573 = vmatpush.msra.mxu0 0.0
      %574 = vmatpush.msra.mxu0 0.0
      %575 = vmatpush.msra.mxu0 0.0
      %576 = vmatpush.msra.mxu0 0.0
      %577 = vmatpush.msra.mxu0 0.0
      %578 = vmatpush.msra.mxu0 0.0
      %579 = vmatpush.msra.mxu0 %v549
      %580 = vmatpush.msra.mxu0 %v548
      %581 = vmatpush.msra.mxu0 %v547
      %582 = vmatpush.msra.mxu0 %v546
      %583 = vmatmul.f32.gmra.mxu0 %v565
      %v584 = vpop.f32.mrf.mxu0
      %v585 = vadd.f32 0.0, %v584
      %586 = vdwg.mxu0
      %v587 = vadd.f32 %v561, %v585
      %v588 = vtanh.pop %v587
      %v589 = vxor.u32 %v587, 2147483648
      %v590 = vmul.f32 %v589, 1.442695
      %v591 = vpow.pop %v590
      %v592 = vadd.f32 %v591, 1.0
      %v593 = vrcp.pop %v592
      %v594 = vmul.f32 %v592, %v593
      %v595 = vsub.f32 1.0, %v594
      %v596 = vmul.f32 %v593, %v595
      %v597 = vadd.f32 %v593, %v596
      %vm598 = vweird.f32 %v592
      %vm599 = vweird.f32 %v593
      %vm600 = vmor %vm598, %vm599
      %v601 = vsel %vm600, %v593, %v597
      %v602 = vand.u32 2147483647, %v592
      %vm603 = vcmp.eq.f32.partialorder %v602, 8.507059e+37
      %v604 = vand.u32 %v592, 2147483648
      %v605 = vor.u32 1.1754944e-38, %v604
      %v606 = vsel %vm603, %v605, %v601
      %v607 = vmul.f32 1.0, %v606
      %v608 = vsel %vm55, %v588, %v607
      %v609 = vmul.f32 %v608, %v557
      %611 = vrot.lane.b32.xlu0 %v608, 64
      %v612 = vpop.permute.xlu0 %611
      %v614 = vmul.f32 %v608, %v612
      %616 = vrot.lane.b32.xlu0 %v614, 32
      %v617 = vpop.permute.xlu0 %616
      %v619 = vadd.f32 %v609, %v617
      %v620 = vtanh.pop %v619
      %622 = vrot.lane.b32.xlu0 %v620, 64
      %v623 = vpop.permute.xlu0 %622
      %v625 = vmul.f32 %v608, %v623
    $region87: #{lstm_classifier_forward.1} parent=1 // loop_footer
      %s555 = sadd.s32 1, %s551
    $region88: #{lstm_classifier_forward.1} parent=1 // loop_footer_branch
      %550 = sbr.rel target = $region84
    $region89: #{lstm_classifier_forward.1} parent=1 // loop_exit
      _
    %v626 = vld [vmem:[%s13] sm:$0xff]
    %v627 = vld [vmem:[%s13 + $0x8] sm:$0xff]
    %v628 = vld [vmem:[%s13 + $0x10] sm:$0xff]
    %v629 = vld [vmem:[%s13 + $0x18] sm:$0xff]
    %v630 = vld [vmem:[%s13 + $0x20] sm:$0xff]
    %v631 = vld [vmem:[%s13 + $0x28] sm:$0xff]
    %v632 = vld [vmem:[%s13 + $0x30] sm:$0xff]
    %v633 = vld [vmem:[%s13 + $0x38] sm:$0xff]
    %635 = vrot.lane.b32.xlu0 %v556, 32
    %v636 = vpop.permute.xlu0 %635
    %v637 = vsel %vm322, %v636, 0
    %639 = vmatpush.msra.mxu0 0.0
    %640 = vmatpush.msra.mxu0 0.0
    %641 = vmatpush.msra.mxu0 0.0
    %642 = vmatpush.msra.mxu0 0.0
    %643 = vmatpush.msra.mxu0 0.0
    %644 = vmatpush.msra.mxu0 0.0
    %645 = vmatpush.msra.mxu0 0.0
    %646 = vmatpush.msra.mxu0 0.0
    %647 = vmatpush.msra.mxu0 0.0
    %648 = vmatpush.msra.mxu0 0.0
    %649 = vmatpush.msra.mxu0 0.0
    %650 = vmatpush.msra.mxu0 0.0
    %651 = vmatpush.msra.mxu0 %v633
    %652 = vmatpush.msra.mxu0 %v632
    %653 = vmatpush.msra.mxu0 %v631
    %654 = vmatpush.msra.mxu0 %v630
    %655 = vmatmul.f32.gmra.mxu0 %v637
    %v656 = vpop.f32.mrf.mxu0
    %v657 = vadd.f32 0.0, %v656
    %658 = vdwg.mxu0
    %660 = vrot.lane.b32.xlu0 %v477, 32
    %v661 = vpop.permute.xlu0 %660
    %v662 = vsel %vm322, %v661, 0
    %664 = vmatpush.msra.mxu0 0.0
    %665 = vmatpush.msra.mxu0 0.0
    %666 = vmatpush.msra.mxu0 0.0
    %667 = vmatpush.msra.mxu0 0.0
    %668 = vmatpush.msra.mxu0 0.0
    %669 = vmatpush.msra.mxu0 0.0
    %670 = vmatpush.msra.mxu0 0.0
    %671 = vmatpush.msra.mxu0 0.0
    %672 = vmatpush.msra.mxu0 0.0
    %673 = vmatpush.msra.mxu0 0.0
    %674 = vmatpush.msra.mxu0 0.0
    %675 = vmatpush.msra.mxu0 0.0
    %676 = vmatpush.msra.mxu0 %v629
    %677 = vmatpush.msra.mxu0 %v628
    %678 = vmatpush.msra.mxu0 %v627
    %679 = vmatpush.msra.mxu0 %v626
    %680 = vmatmul.f32.gmra.mxu0 %v662
    %v681 = vpop.f32.mrf.mxu0
    %v682 = vadd.f32 %v657, %v681
    %683 = vdwg.mxu0
    %v684 = vld [vmem:[%s14] sm:$0x1]
    %v686 = vperm.slane %v684, 0
    %v688 = vadd.f32 %v682, %v686
    %vm689 = vcmask 17408
    %690 = vst.msk [vmem:[#allocation6] sm:$0x3] %vm689, %v688
    // Predicated region
    $region90: #{lstm_classifier_forward.1} parent=1 // pred_check
      _
    $region91: #{lstm_classifier_forward.1} parent=1 // pred_check_branch
      %692 = sbr.rel (0) target = $region93
    $region92: #{lstm_classifier_forward.1} parent=1 // pred_region
      %694 = vsyncadd [#allocation7], 0
      %s696 = sshll.u32 [#allocation6], 4
      %s697 = int_to_ptr.vmem [resolvable:$true] %s696
      %s698 = sshll.u32 %s15, 4
      %s699 = int_to_ptr.hbm [resolvable:$true] %s698
      %701 = dma.vmem_to_hbm [thread:$0]  %s697, 32, %s699, [#allocation7]
    $region93: #{lstm_classifier_forward.1} parent=1 // pred_fallthru
      _
    // Predicated region
    $region94: #{lstm_classifier_forward.1} parent=1 // pred_check
      _
    $region95: #{lstm_classifier_forward.1} parent=1 // pred_check_branch
      %703 = sbr.rel (0) target = $region97
    $region96: #{lstm_classifier_forward.1} parent=1 // pred_region
      %705 = dma.done [#allocation7], 32
    $region97: #{lstm_classifier_forward.1} parent=1 // pred_fallthru
      _
    %706 = vsyncpa [#allocation7], 1

</llo_original>
